<compile_context>
chip_gen: v7x
topology: tpu7x:2x2x1
jax: 0.10.0
libtpu: 0.0.40
codegen_flags: <defaults>
</compile_context>

<pallas_src>
import functools

import jax
import jax.numpy as jnp
from jax import lax
from jax.experimental import pallas as pl
from jax.experimental.pallas import tpu as pltpu


_LANES = 384            # 128 nodes * 3 coords per slab row (multiple of 128 and 3)
_MAX_BLOCK_ROWS = 1024  # 1024 x 384 x 4B = 1.5 MiB per block buffer


def _round_up(x, m):
    return (x + m - 1) // m * m


def _coors_norm_jax(coors, scale, eps):
    """Fused pure-JAX fallback (== module forward); used for tiny inputs / D != 3."""
    norm = jnp.linalg.norm(coors, axis=-1, keepdims=True)
    return coors / jnp.maximum(norm, eps) * scale[0]


def _coors_norm_kernel(scale_ref, mask_ref, x_ref, o_ref, *, eps):
    # x_ref / o_ref: (rows, 384) VMEM blocks, AoS lanes [x0 y0 z0 x1 y1 z1 ...]
    # (128 whole nodes per row).  mask_ref: (1, 384) f32, 1.0 on every node's
    # middle (y) lane.  scale_ref: (1,) SMEM scalar parameter.
    x = x_ref[...].astype(jnp.float32)
    w = x.shape[-1]

    # Squared-coordinate 3-lane box sum centred on each node's middle lane.
    # Rolls by +1 and by w-1 (== -1) are circular within a row; the sum is
    # symmetric, so it does not depend on the rotate direction convention.
    sq = x * x
    nsq = sq + pltpu.roll(sq, 1, axis=1) + pltpu.roll(sq, w - 1, axis=1)

    # 1/max(norm, eps) == rsqrt(max(norm^2, eps^2)) for norm^2 >= 0; fold the
    # learnable scale and the centre-lane mask into one (1, w) factor that
    # broadcasts over the sublane (row) axis.
    inv_c = lax.rsqrt(jnp.maximum(nsq, eps * eps)) * (mask_ref[...] * scale_ref[0])

    # Scatter the per-node factor from the middle lane to its two neighbours
    # (off-centre lanes are zero, so this is also roll-direction agnostic).
    inv = inv_c + pltpu.roll(inv_c, 1, axis=1) + pltpu.roll(inv_c, w - 1, axis=1)

    o_ref[...] = (x * inv).astype(o_ref.dtype)


def coors_norm(coors, scale, eps=1e-8, *, min_pallas_nodes=1024,
               max_block_rows=_MAX_BLOCK_ROWS):
    """coors: (B, N, D) float array; scale: (1,) float parameter."""
    B, N, D = coors.shape
    M = B * N

    # Tiny inputs (or non-3D coordinates) are faster as one fused XLA op.
    if D != 3 or M < min_pallas_nodes:
        return _coors_norm_jax(coors, scale, eps)

    total = M * 3
    flat = coors.reshape(total)                       # free, contiguous reshape

    # Lane-dense AoS slab (R, 384). Only pad (an HBM copy) when B*N is not a
    # multiple of 128; padded coords are zero -> output zeros there (no NaN).
    padded = total if total % _LANES == 0 else _round_up(total, 8 * _LANES)
    if padded != total:
        flat = jnp.pad(flat, (0, padded - total))
    R = padded // _LANES
    x2d = flat.reshape(R, _LANES)

    # Rows per block: as big as comfortably fits VMEM, but >= 2 grid steps
    # when possible so ("parallel",) shards across v7x's two TensorCores.
    if R < 8:
        rows = R                                      # full extent (allowed)
    else:
        rows = max(8, min(max_block_rows, _round_up(pl.cdiv(R, 2), 8)))
    grid = (pl.cdiv(R, rows),)

    # 1.0 on each node's middle (y) lane, 0.0 elsewhere; DMA'd once (constant
    # block index across the grid).
    mask = (jnp.arange(_LANES, dtype=jnp.int32) % 3 == 1)
    mask = mask.astype(jnp.float32).reshape(1, _LANES)

    scale_vec = jnp.asarray(scale, dtype=jnp.float32).reshape(1)

    kernel = functools.partial(_coors_norm_kernel, eps=float(eps))

    out2d = pl.pallas_call(
        kernel,
        out_shape=jax.ShapeDtypeStruct((R, _LANES), coors.dtype),
        grid=grid,
        in_specs=[
            pl.BlockSpec(memory_space=pltpu.MemorySpace.SMEM),    # scale scalar
            pl.BlockSpec((1, _LANES), lambda i: (0, 0)),          # centre-lane mask
            pl.BlockSpec((rows, _LANES), lambda i: (i, 0)),       # coord slab tile
        ],
        out_specs=pl.BlockSpec((rows, _LANES), lambda i: (i, 0)),
        compiler_params=pltpu.CompilerParams(
            dimension_semantics=("parallel",),
            vmem_limit_bytes=40 * 1024 * 1024,
        ),
        cost_estimate=pl.CostEstimate(
            flops=12 * M, transcendentals=3 * M, bytes_accessed=2 * total * 4),
    )(scale_vec, mask, x2d)

    out = out2d.reshape(padded)
    if padded != total:
        out = out[:total]
    return out.reshape(B, N, 3)


def coors_norm_ref(coors, scale, eps=1e-8):
    norm = jnp.linalg.norm(coors, axis=-1, keepdims=True)
    return coors / jnp.maximum(norm, eps) * scale[0]


if __name__ == "__main__":
    key = jax.random.PRNGKey(0)
    k1, k2, k3 = jax.random.split(key, 3)

    # Small shapes consistent with the module: 2 molecules x 16 atoms x xyz.
    B, N, D = 2, 16, 3
    coors = jax.random.normal(k1, (B, N, D), dtype=jnp.float32)
    scale = jnp.full((1,), 1.0, dtype=jnp.float32)            # scale_init = 1.0

    out = coors_norm(coors, scale, eps=1e-8, min_pallas_nodes=0)   # force kernel path
    out = jax.block_until_ready(out)
    ref = coors_norm_ref(coors, scale, eps=1e-8)
    assert out.shape == (B, N, D)
    assert jnp.allclose(out, ref, atol=1e-5, rtol=1e-5), "mismatch vs reference"

    # Node count multiple of 128: zero-copy relayout path, 2 parallel grid steps.
    coors2 = jax.random.normal(k2, (4, 512, 3), dtype=jnp.float32)
    scale2 = jnp.full((1,), 0.5, dtype=jnp.float32)
    out2 = jax.block_until_ready(coors_norm(coors2, scale2, eps=1e-8))
    ref2 = coors_norm_ref(coors2, scale2, eps=1e-8)
    assert jnp.allclose(out2, ref2, atol=1e-5, rtol=1e-5), "mismatch (aligned path)"

    # Ragged last block (9 slab rows, 8-row blocks) with no wrapper padding.
    coors3 = jax.random.normal(k3, (3, 384, 3), dtype=jnp.float32)
    out3 = jax.block_until_ready(coors_norm(coors3, scale2, eps=1e-8))
    ref3 = coors_norm_ref(coors3, scale2, eps=1e-8)
    assert jnp.allclose(out3, ref3, atol=1e-5, rtol=1e-5), "mismatch (ragged path)"

    print("KERNEL_OK")
</pallas_src>

<mosaic_0001>
module attributes {stable_mosaic.version = 11 : i64} {
  func.func @_coors_norm_kernel(%arg0: i32, %arg1: memref<1xf32, #tpu.memory_space<smem>>, %arg2: memref<1x384xf32, #tpu.memory_space<vmem>>, %arg3: memref<8x384xf32, #tpu.memory_space<vmem>>, %arg4: memref<8x384xf32, #tpu.memory_space<vmem>>) attributes {dimension_semantics = [#tpu.dimension_semantics<parallel>], iteration_bounds = array<i64: 1>, scalar_prefetch = 0 : i64, scratch_operands = 0 : i64, tpu.core_type = #tpu.core_type<tc>, window_params = [{transform_indices = @transform_0, window_bounds = array<i64: 1>}, {pipeline_mode = #tpu.pipeline_mode<synchronous>, transform_indices = @transform_1, window_bounds = array<i64: 1, 384>}, {transform_indices = @transform_2, window_bounds = array<i64: 8, 384>}, {transform_indices = @transform_3, window_bounds = array<i64: 8, 384>}]} {
    %c0 = arith.constant 0 : index
    %c0_0 = arith.constant 0 : index
    %0 = vector.load %arg3[%c0, %c0_0] : memref<8x384xf32, #tpu.memory_space<vmem>>, vector<8x384xf32>
    %1 = arith.mulf %0, %0 : vector<8x384xf32>
    %c1_i32 = arith.constant 1 : i32
    %2 = tpu.dynamic_rotate %1 by %c1_i32 dim 1 : vector<8x384xf32>, i32 -> vector<8x384xf32>
    %3 = arith.addf %1, %2 : vector<8x384xf32>
    %c383_i32 = arith.constant 383 : i32
    %4 = tpu.dynamic_rotate %1 by %c383_i32 dim 1 : vector<8x384xf32>, i32 -> vector<8x384xf32>
    %5 = arith.addf %3, %4 : vector<8x384xf32>
    %cst = arith.constant 1.000000e-16 : f32
    %6 = vector.broadcast %cst : f32 to vector<8x384xf32>
    %7 = arith.maximumf %5, %6 : vector<8x384xf32>
    %8 = math.rsqrt %7 : vector<8x384xf32>
    %c0_1 = arith.constant 0 : index
    %c0_2 = arith.constant 0 : index
    %9 = vector.load %arg2[%c0_1, %c0_2] : memref<1x384xf32, #tpu.memory_space<vmem>>, vector<1x384xf32>
    %c0_3 = arith.constant 0 : index
    %10 = memref.load %arg1[%c0_3] : memref<1xf32, #tpu.memory_space<smem>>
    %11 = vector.broadcast %10 : f32 to vector<1x384xf32>
    %12 = arith.mulf %9, %11 : vector<1x384xf32>
    %13 = vector.broadcast %12 : vector<1x384xf32> to vector<8x384xf32>
    %14 = arith.mulf %8, %13 : vector<8x384xf32>
    %c1_i32_4 = arith.constant 1 : i32
    %15 = tpu.dynamic_rotate %14 by %c1_i32_4 dim 1 : vector<8x384xf32>, i32 -> vector<8x384xf32>
    %16 = arith.addf %14, %15 : vector<8x384xf32>
    %c383_i32_5 = arith.constant 383 : i32
    %17 = tpu.dynamic_rotate %14 by %c383_i32_5 dim 1 : vector<8x384xf32>, i32 -> vector<8x384xf32>
    %18 = arith.addf %16, %17 : vector<8x384xf32>
    %19 = arith.mulf %0, %18 : vector<8x384xf32>
    %c0_6 = arith.constant 0 : index
    %c0_7 = arith.constant 0 : index
    %20 = vector.load %arg4[%c0_6, %c0_7] : memref<8x384xf32, #tpu.memory_space<vmem>>, vector<8x384xf32>
    tpu.vector_store %arg4[%c0_6, %c0_7], %19 {strides = array<i32>} : memref<8x384xf32, #tpu.memory_space<vmem>>, vector<8x384xf32>,
    return
  }
  func.func @transform_0(%arg0: i32) -> i32 {
    %c0_i32 = arith.constant 0 : i32
    %c0_i32_0 = arith.constant 0 : i32
    return %c0_i32 : i32
  }
  func.func @transform_1(%arg0: i32) -> (i32, i32) {
    %c0_i32 = arith.constant 0 : i32
    %c0_i32_0 = arith.constant 0 : i32
    %c0_i32_1 = arith.constant 0 : i32
    return %c0_i32, %c0_i32_0 : i32, i32
  }
  func.func @transform_2(%arg0: i32) -> (i32, i32) {
    %c0_i32 = arith.constant 0 : i32
    %c0_i32_0 = arith.constant 0 : i32
    return %arg0, %c0_i32 : i32, i32
  }
  func.func @transform_3(%arg0: i32) -> (i32, i32) {
    %c0_i32 = arith.constant 0 : i32
    %c0_i32_0 = arith.constant 0 : i32
    return %arg0, %c0_i32 : i32, i32
  }
}

</mosaic_0001>

<llo_original>
// kernel: tpu_custom_call.1
$region0: #{tpu_custom_call.1}
  #allocation0 [shape = 'u32[]', space=smem, size = 0x4, offset = 0x4, fixed_abs, tag = 'smem constant byte address 0x4 - core index']
  #allocation1 [shape = 'u32[144,128]{1,0:T(1,128)}', space=vmem, size = 0x12000, scoped, tag = 'internal scratch']
  #allocation2 [shape = 'f32[1]{0:T(128)S(6)}', space=smem, size = 0x200, scoped, tag = 'scoped memory for tpu_custom_call.1']
  %s0 = inlined_call_operand.<no memory space> [shape: f32[1], index: 0, kind: input, shape index: {}]
  %s1 = inlined_call_operand.vmem [shape: f32[1,384], index: 1, kind: input, shape index: {}]
  %s2 = inlined_call_operand.hbm [shape: f32[8,384], index: 2, kind: input, shape index: {}]
  %s3 = inlined_call_operand.hbm [shape: f32[8,384], index: 3, kind: output, shape index: {}]
  %s4 = sld [smem:[#allocation0]]
  $region26: #{tpu_custom_call.1} parent=0
    _
  %s6 = ssub.s32 1, %s4
  %s7 = scalar_select 0, %s6, %s4
  %8 = sst [smem:[#allocation2]] %s0
  $region1: #{tpu_custom_call.1} parent=0
    #allocation3 [shape = 'u8[12288]{0}', space=vmem, size = 0x3000, scoped, tag = 'input window, operand 2, single buffered']
    #allocation4 [shape = 's32[1]{0}', space=sflag, size = 0x4, scoped, tag = 'scoped memory for tpu_custom_call.1']
    #allocation5 [shape = 's32[1]{0}', space=sflag, size = 0x4, scoped, tag = 'scoped memory for tpu_custom_call.1']
    #allocation6 [shape = 'u8[12288]{0}', space=vmem, size = 0x3000, scoped, tag = 'output window, operand 0, single buffered']
    %9 = vsyncpa [#allocation4], 0
    %10 = vsyncpa [#allocation5], 0
    // Predicated region
    $region2: #{tpu_custom_call.1} parent=1 // pred_check
      _
    $region3: #{tpu_custom_call.1} parent=1 // pred_check_branch
      %12 = sbr.rel (0) target = $region5
    $region4: #{tpu_custom_call.1} parent=1 // pred_region
      _
    $region5: #{tpu_custom_call.1} parent=1 // pred_fallthru
      _
    // Predicated region
    $region6: #{tpu_custom_call.1} parent=1 // pred_check
      _
    $region7: #{tpu_custom_call.1} parent=1 // pred_check_branch
      %14 = sbr.rel (0) target = $region9
    $region8: #{tpu_custom_call.1} parent=1 // pred_region
      _
    $region9: #{tpu_custom_call.1} parent=1 // pred_fallthru
      _
    // Predicated region
    $region10: #{tpu_custom_call.1} parent=1 // pred_check
      _
    $region11: #{tpu_custom_call.1} parent=1 // pred_check_branch
      %16 = sbr.rel (0) target = $region13
    $region12: #{tpu_custom_call.1} parent=1 // pred_region
      %s18 = ssub.s32 384, 384
      %19 = vsyncadd [#allocation4], %s18
      %s21 = sshll.u32 [#allocation3], 4
      %s22 = int_to_ptr.vmem [resolvable:$true] %s21
      %24 = dma.hbm_to_vmem [thread:$0]  %s2, 384, %s22, [#allocation4]
    $region13: #{tpu_custom_call.1} parent=1 // pred_fallthru
      _
    // Predicated region
    $region14: #{tpu_custom_call.1} parent=1 // pred_check
      _
    $region15: #{tpu_custom_call.1} parent=1 // pred_check_branch
      %26 = sbr.rel (0) target = $region17
    $region16: #{tpu_custom_call.1} parent=1 // pred_region
      %27 = dma.done [#allocation4], 384
    $region17: #{tpu_custom_call.1} parent=1 // pred_fallthru
      _
    %v28 = vld [vmem:[#allocation3] sm:$0xff]
    %v29 = vld [vmem:[#allocation3 + $0x8] sm:$0xff]
    %v30 = vld [vmem:[#allocation3 + $0x10] sm:$0xff]
    %v31 = vmul.f32 %v28, %v28
    %v32 = vmul.f32 %v29, %v29
    %v33 = vmul.f32 %v30, %v30
    %34 = vrot.lane.b32.xlu0 %v31, 1
    %v35 = vpop.permute.xlu0 %34
    %36 = vrot.lane.b32.xlu0 %v32, 1
    %v37 = vpop.permute.xlu0 %36
    %38 = vrot.lane.b32.xlu0 %v33, 1
    %v39 = vpop.permute.xlu0 %38
    %v40 = vlaneseq
    %v41 = vand.u32 %v40, 127
    %vm42 = vcmp.lt.s32.totalorder %v41, 1
    %v43 = vsel %vm42, %v37, %v39
    %v44 = vsel %vm42, %v35, %v37
    %v45 = vsel %vm42, %v39, %v35
    %v46 = vadd.f32 %v31, %v45
    %v47 = vadd.f32 %v32, %v44
    %v48 = vadd.f32 %v33, %v43
    %49 = vrot.lane.b32.xlu0 %v31, 127
    %v50 = vpop.permute.xlu0 %49
    %51 = vrot.lane.b32.xlu0 %v32, 127
    %v52 = vpop.permute.xlu0 %51
    %53 = vrot.lane.b32.xlu0 %v33, 127
    %v54 = vpop.permute.xlu0 %53
    %vm55 = vcmp.lt.s32.totalorder %v41, 127
    %v56 = vsel %vm55, %v52, %v54
    %v57 = vsel %vm55, %v50, %v52
    %v58 = vsel %vm55, %v54, %v50
    %v59 = vadd.f32 %v46, %v57
    %v60 = vadd.f32 %v47, %v56
    %v61 = vadd.f32 %v48, %v58
    %v62 = vmax.f32 %v59, 1e-16
    %v63 = vmax.f32 %v60, 1e-16
    %v64 = vmax.f32 %v61, 1e-16
    %v65 = vrsqrt.pop %v62
    %v66 = vrsqrt.pop %v63
    %v67 = vrsqrt.pop %v64
    %v68 = vld [vmem:[%s1] sm:$0x7]
    %s69 = sld [smem:[#allocation2]]
    %v70 = vstv %s69
    %v71 = vmul.f32 %v68, %v70
    %v73 = vlaneseq
    %v74 = vshrl.u32 %v73, 7
    %v75 = vsub.s32 0, %v74
    %v76 = vrot.slane %v71, %v75
    %v77 = vlaneseq
    %v78 = vshrl.u32 %v77, 7
    %v79 = vsub.s32 1, %v78
    %v80 = vrot.slane %v71, %v79
    %v81 = vlaneseq
    %v82 = vshrl.u32 %v81, 7
    %v83 = vsub.s32 2, %v82
    %v84 = vrot.slane %v71, %v83
    %v88 = vmul.f32 %v65, %v76
    %v89 = vmul.f32 %v66, %v80
    %v90 = vmul.f32 %v67, %v84
    %91 = vrot.lane.b32.xlu0 %v88, 1
    %v92 = vpop.permute.xlu0 %91
    %93 = vrot.lane.b32.xlu0 %v89, 1
    %v94 = vpop.permute.xlu0 %93
    %95 = vrot.lane.b32.xlu0 %v90, 1
    %v96 = vpop.permute.xlu0 %95
    %v97 = vsel %vm42, %v94, %v96
    %v98 = vsel %vm42, %v92, %v94
    %v99 = vsel %vm42, %v96, %v92
    %v100 = vadd.f32 %v88, %v99
    %v101 = vadd.f32 %v89, %v98
    %v102 = vadd.f32 %v90, %v97
    %103 = vrot.lane.b32.xlu0 %v88, 127
    %v104 = vpop.permute.xlu0 %103
    %105 = vrot.lane.b32.xlu0 %v89, 127
    %v106 = vpop.permute.xlu0 %105
    %107 = vrot.lane.b32.xlu0 %v90, 127
    %v108 = vpop.permute.xlu0 %107
    %v109 = vsel %vm55, %v106, %v108
    %v110 = vsel %vm55, %v104, %v106
    %v111 = vsel %vm55, %v108, %v104
    %v112 = vadd.f32 %v100, %v110
    %v113 = vadd.f32 %v101, %v109
    %v114 = vadd.f32 %v102, %v111
    %v115 = vmul.f32 %v28, %v112
    %v116 = vmul.f32 %v29, %v113
    %v117 = vmul.f32 %v30, %v114
    %118 = vst [vmem:[#allocation6] sm:$0xff] %v115
    %119 = vst [vmem:[#allocation6 + $0x8] sm:$0xff] %v116
    %120 = vst [vmem:[#allocation6 + $0x10] sm:$0xff] %v117
    // Predicated region
    $region18: #{tpu_custom_call.1} parent=1 // pred_check
      _
    $region19: #{tpu_custom_call.1} parent=1 // pred_check_branch
      %122 = sbr.rel (0) target = $region21
    $region20: #{tpu_custom_call.1} parent=1 // pred_region
      %s124 = ssub.s32 384, 384
      %125 = vsyncadd [#allocation5], %s124
      %s127 = sshll.u32 [#allocation6], 4
      %s128 = int_to_ptr.vmem [resolvable:$true] %s127
      %130 = dma.vmem_to_hbm [thread:$0]  %s128, 384, %s3, [#allocation5]
    $region21: #{tpu_custom_call.1} parent=1 // pred_fallthru
      _
    // Predicated region
    $region22: #{tpu_custom_call.1} parent=1 // pred_check
      _
    $region23: #{tpu_custom_call.1} parent=1 // pred_check_branch
      %132 = sbr.rel (0) target = $region25
    $region24: #{tpu_custom_call.1} parent=1 // pred_region
      %133 = dma.done [#allocation5], 384
    $region25: #{tpu_custom_call.1} parent=1 // pred_fallthru
      _
    %134 = vsyncpa [#allocation4], 1
    %135 = vsyncpa [#allocation5], 1

</llo_original>
